<compile_context>
chip_gen: v7x
topology: tpu7x:2x2x1
jax: 0.10.0
libtpu: 0.0.40
codegen_flags: <defaults>
</compile_context>

<pallas_src>
import jax
import jax.numpy as jnp
from jax.experimental import pallas as pl
from jax.experimental.pallas import tpu as pltpu


_LANE = 128
_SUBLANE = 8


def _round_up(n, m):
    return ((n + m - 1) // m) * m


def _vmem_capacity_bytes():
    try:
        return int(pltpu.get_tpu_info().vmem_capacity_bytes)
    except Exception:
        return 64 * 1024 * 1024  # conservative: v7x per-TensorCore VMEM


# --------------------------------------------------------------------------
# In-kernel exact-form GELU (erf form, matching torch.nn.functional.gelu
# default).  erf uses the Abramowitz & Stegun 7.1.26 polynomial
# (|error| < 1.5e-7); the divide goes through the EUP approximate reciprocal.
# Kept in f32 (v5e has no bf16 VPU/EUP; f32 is also the accumulator dtype).
# --------------------------------------------------------------------------
def _erf_approx(x):
    a1, a2, a3, a4, a5 = (0.254829592, -0.284496736, 1.421413741,
                          -1.453152027, 1.061405429)
    p = 0.3275911
    ax = jnp.abs(x)
    t = pl.reciprocal(1.0 + p * ax, approx=True)      # EUP vrcp, off the VALU slot
    poly = ((((a5 * t + a4) * t + a3) * t + a2) * t + a1) * t
    y = 1.0 - poly * jnp.exp(-ax * ax)
    return jnp.where(x < 0, -y, y)


def _gelu_exact(x):
    # 0.5 * x * (1 + erf(x / sqrt(2)))
    return 0.5 * x * (1.0 + _erf_approx(x * 0.7071067811865476))


# --------------------------------------------------------------------------
# Kernel A: weights fully resident in VMEM, 1-D "parallel" token grid.
# --------------------------------------------------------------------------
def _ffn_kernel_resident(x_ref, w1_ref, b1_ref, w2_ref, b2_ref, o_ref):
    xb = x_ref[...].astype(jnp.bfloat16)                              # (TM, dh)
    h = jnp.dot(xb, w1_ref[...], preferred_element_type=jnp.float32) + b1_ref[...]
    h = _gelu_exact(h)                                                # (TM, df) f32
    y = jnp.dot(h.astype(jnp.bfloat16), w2_ref[...],
                preferred_element_type=jnp.float32) + b2_ref[...]
    o_ref[...] = y.astype(o_ref.dtype)
    # TODO(synk): nn.Dropout omitted (eval mode / p treated as 0).


# --------------------------------------------------------------------------
# Kernel B: d_ff-tiled reduction (for weights too large to keep resident).
# grid = (token tiles, d_ff tiles); f32 accumulator in VMEM scratch.
# --------------------------------------------------------------------------
def _ffn_kernel_ff_tiled(x_ref, w1_ref, b1_ref, w2_ref, b2_ref, o_ref, acc_ref):
    k = pl.program_id(1)

    @pl.when(k == 0)
    def _():
        acc_ref[...] = jnp.zeros_like(acc_ref)

    xb = x_ref[...].astype(jnp.bfloat16)                              # (TM, dh)
    h = jnp.dot(xb, w1_ref[...], preferred_element_type=jnp.float32) + b1_ref[...]
    h = _gelu_exact(h)                                                # (TM, tf) f32
    acc_ref[...] += jnp.dot(h.astype(jnp.bfloat16), w2_ref[...],
                            preferred_element_type=jnp.float32)

    @pl.when(k == pl.num_programs(1) - 1)
    def _():
        o_ref[...] = (acc_ref[...] + b2_ref[...]).astype(o_ref.dtype)


def poswise_ffn(x, w1, b1, w2, b2, *, block_tokens=512, ff_block=None):
    """Fused y = gelu(x @ w1 + b1) @ w2 + b2 per token.

    x:  (B, S, d_hidn) f32
    w1: (d_hidn, d_ff), b1: (d_ff,), w2: (d_ff, d_hidn), b2: (d_hidn,)
    """
    B, S, d_hidn = x.shape
    d_ff = w1.shape[1]
    tokens = B * S

    # ---- pad hidden dims to 128 lanes (exact: zero rows/cols, gelu(0) = 0) ----
    dhp = _round_up(d_hidn, _LANE)
    dfp = _round_up(d_ff, _LANE)

    x2 = x.reshape(tokens, d_hidn)
    if dhp != d_hidn:
        x2 = jnp.pad(x2, ((0, 0), (0, dhp - d_hidn)))
    w1p = jnp.pad(w1, ((0, dhp - d_hidn), (0, dfp - d_ff))).astype(jnp.bfloat16)
    w2p = jnp.pad(w2, ((0, dfp - d_ff), (0, dhp - d_hidn))).astype(jnp.bfloat16)
    b1p = jnp.pad(b1, (0, dfp - d_ff)).astype(jnp.float32).reshape(1, dfp)
    b2p = jnp.pad(b2, (0, dhp - d_hidn)).astype(jnp.float32).reshape(1, dhp)

    # ---- token-tile size: multiple of 8; ragged tail handled by cdiv masking;
    #      shrink so there are >=2 grid steps whenever possible (megacore). ----
    tm = max(_SUBLANE, min(block_tokens, _round_up(tokens, _SUBLANE)))
    tm = (tm // _SUBLANE) * _SUBLANE
    while pl.cdiv(tokens, tm) < 2 and tm > _SUBLANE:
        tm = max(_SUBLANE, _round_up(tm // 2, _SUBLANE))
    num_token_tiles = int(pl.cdiv(tokens, tm))

    vmem_cap = _vmem_capacity_bytes()
    bf16, f32 = 2, 4

    # Resident-weight footprint.  Every input counts its default 2 pipeline
    # buffers — including the constant-index weights (review item).
    resident_bytes = (
        2 * (2 * dhp * dfp * bf16)       # W1 + W2 (bf16), double-buffered
        + 2 * ((dfp + dhp) * f32)        # b1 + b2 (f32), double-buffered
        + 2 * (2 * tm * dhp * f32)       # x tile + out tile (f32), double-buffered
        + 2 * (tm * dfp * f32)           # (TM, d_ff) f32 GELU intermediate + headroom
    )

    use_ff_tiling = ((ff_block is not None and ff_block < dfp)
                     or resident_bytes > 0.5 * vmem_cap)

    if not use_ff_tiling:
        grid = (num_token_tiles,)
        in_specs = [
            pl.BlockSpec((tm, dhp), lambda i: (i, 0)),      # x tile
            pl.BlockSpec((dhp, dfp), lambda i: (0, 0)),     # W1 (resident)
            pl.BlockSpec((1, dfp), lambda i: (0, 0)),       # b1
            pl.BlockSpec((dfp, dhp), lambda i: (0, 0)),     # W2 (resident)
            pl.BlockSpec((1, dhp), lambda i: (0, 0)),       # b2
        ]
        out_spec = pl.BlockSpec((tm, dhp), lambda i: (i, 0))
        scratch = []
        kernel = _ffn_kernel_resident
        dim_sem = ("parallel",)
        footprint = resident_bytes
    else:
        # d_ff tile: multiple of 128 that divides the padded d_ff.
        tf = ff_block if ff_block is not None else 512
        tf = max(_LANE, min(dfp, _round_up(tf, _LANE)))
        while dfp % tf != 0:
            tf -= _LANE
        num_ff_tiles = dfp // tf
        grid = (num_token_tiles, num_ff_tiles)
        in_specs = [
            pl.BlockSpec((tm, dhp), lambda i, k: (i, 0)),   # x tile (reused over k)
            pl.BlockSpec((dhp, tf), lambda i, k: (0, k)),   # W1 d_ff slice
            pl.BlockSpec((1, tf), lambda i, k: (0, k)),     # b1 slice
            pl.BlockSpec((tf, dhp), lambda i, k: (k, 0)),   # W2 d_ff slice
            pl.BlockSpec((1, dhp), lambda i, k: (0, 0)),    # b2
        ]
        out_spec = pl.BlockSpec((tm, dhp), lambda i, k: (i, 0))
        scratch = [pltpu.VMEM((tm, dhp), jnp.float32)]
        kernel = _ffn_kernel_ff_tiled
        dim_sem = ("parallel", "arbitrary")
        footprint = (
            2 * (2 * dhp * tf * bf16)    # W1/W2 tiles, double-buffered
            + 2 * ((tf + dhp) * f32)     # bias tiles, double-buffered
            + 2 * (2 * tm * dhp * f32)   # x + out tiles, double-buffered
            + 2 * (tm * tf * f32)        # GELU intermediate + headroom
            + tm * dhp * f32             # f32 accumulator scratch
        )

    # Per-generation VMEM cap (<= 75% of physical), never below a 16 MiB floor.
    vmem_limit = int(min(0.75 * vmem_cap, max(16 * 1024 * 1024, 1.5 * footprint)))

    cost = pl.CostEstimate(
        flops=4 * tokens * dhp * dfp,                       # two matmuls
        transcendentals=tokens * dfp,                       # exp (+ vrcp) per GELU elem
        bytes_accessed=(2 * tokens * dhp * f32              # x in + y out
                        + 2 * dhp * dfp * bf16              # W1 + W2
                        + (dfp + dhp) * f32))               # biases

    out = pl.pallas_call(
        kernel,
        grid_spec=pltpu.PrefetchScalarGridSpec(
            num_scalar_prefetch=0,
            grid=grid,
            in_specs=in_specs,
            out_specs=out_spec,
            scratch_shapes=scratch),
        out_shape=jax.ShapeDtypeStruct((tokens, dhp), x.dtype),
        compiler_params=pltpu.CompilerParams(
            dimension_semantics=dim_sem,
            vmem_limit_bytes=vmem_limit),
        cost_estimate=cost,
    )(x2, w1p, b1p, w2p, b2p)

    return out[:, :d_hidn].reshape(B, S, d_hidn)


# --------------------------------------------------------------------------
# Plain-JAX mirror of the PyTorch forward (eval mode) for verification.
# --------------------------------------------------------------------------
def _reference(x, w1, b1, w2, b2):
    h = x @ w1 + b1
    h = 0.5 * h * (1.0 + jax.lax.erf(h * 0.7071067811865476))   # exact erf GELU
    return h @ w2 + b2                                           # dropout = identity


if __name__ == "__main__":
    def make_params(key, d_hidn, d_ff):
        k1, k2, k3, k4 = jax.random.split(key, 4)
        # Parameters in PyTorch Conv1d layout: weight (out_ch, in_ch, 1), bias (out_ch,)
        conv1_w = (0.02 * jax.random.normal(k1, (d_ff, d_hidn, 1))).astype(jnp.float32)
        conv1_b = (0.02 * jax.random.normal(k2, (d_ff,))).astype(jnp.float32)
        conv2_w = (0.02 * jax.random.normal(k3, (d_hidn, d_ff, 1))).astype(jnp.float32)
        conv2_b = (0.02 * jax.random.normal(k4, (d_hidn,))).astype(jnp.float32)
        # kernel_size-1 Conv1d == tokenwise linear: W = conv.weight[:, :, 0].T
        return conv1_w[:, :, 0].T, conv1_b, conv2_w[:, :, 0].T, conv2_b

    key = jax.random.PRNGKey(0)
    kx, kp, kx2, kp2 = jax.random.split(key, 4)

    # ---- small config consistent with the module (d_ff = 4 * d_hidn) ----
    B, S, d_hidn = 2, 8, 32
    d_ff = 4 * d_hidn
    x = jax.random.normal(kx, (B, S, d_hidn), dtype=jnp.float32)
    w1, b1, w2, b2 = make_params(kp, d_hidn, d_ff)

    out = jax.block_until_ready(poswise_ffn(x, w1, b1, w2, b2))
    ref = _reference(x, w1, b1, w2, b2)
    assert out.shape == (B, S, d_hidn)
    assert jnp.allclose(out, ref, atol=2e-3, rtol=2e-2), (
        float(jnp.max(jnp.abs(out - ref))))

    # ---- also exercise the d_ff-tiled accumulation path (large-model variant) ----
    B2, S2, dh2 = 2, 64, 128
    df2 = 4 * dh2
    x2 = jax.random.normal(kx2, (B2, S2, dh2), dtype=jnp.float32)
    w1b, b1b, w2b, b2b = make_params(kp2, dh2, df2)
    out2 = jax.block_until_ready(
        poswise_ffn(x2, w1b, b1b, w2b, b2b, block_tokens=64, ff_block=256))
    ref2 = _reference(x2, w1b, b1b, w2b, b2b)
    assert out2.shape == (B2, S2, dh2)
    assert jnp.allclose(out2, ref2, atol=5e-3, rtol=2e-2), (
        float(jnp.max(jnp.abs(out2 - ref2))))

    print("KERNEL_OK")
</pallas_src>

<mosaic_0001>
module attributes {stable_mosaic.version = 11 : i64} {
  func.func @_ffn_kernel_resident(%arg0: i32, %arg1: memref<8x128xf32, #tpu.memory_space<vmem>>, %arg2: memref<128x128xbf16, #tpu.memory_space<vmem>>, %arg3: memref<1x128xf32, #tpu.memory_space<vmem>>, %arg4: memref<128x128xbf16, #tpu.memory_space<vmem>>, %arg5: memref<1x128xf32, #tpu.memory_space<vmem>>, %arg6: memref<8x128xf32, #tpu.memory_space<vmem>>) attributes {dimension_semantics = [#tpu.dimension_semantics<parallel>], iteration_bounds = array<i64: 2>, scalar_prefetch = 0 : i64, scratch_operands = 0 : i64, tpu.core_type = #tpu.core_type<tc>, window_params = [{transform_indices = @transform_0, window_bounds = array<i64: 8, 128>}, {pipeline_mode = #tpu.pipeline_mode<synchronous>, transform_indices = @transform_1, window_bounds = array<i64: 128, 128>}, {pipeline_mode = #tpu.pipeline_mode<synchronous>, transform_indices = @transform_2, window_bounds = array<i64: 1, 128>}, {pipeline_mode = #tpu.pipeline_mode<synchronous>, transform_indices = @transform_3, window_bounds = array<i64: 128, 128>}, {pipeline_mode = #tpu.pipeline_mode<synchronous>, transform_indices = @transform_4, window_bounds = array<i64: 1, 128>}, {transform_indices = @transform_5, window_bounds = array<i64: 8, 128>}]} {
    %c0 = arith.constant 0 : index
    %c0_0 = arith.constant 0 : index
    %0 = vector.load %arg1[%c0, %c0_0] : memref<8x128xf32, #tpu.memory_space<vmem>>, vector<8x128xf32>
    %1 = arith.truncf %0 : vector<8x128xf32> to vector<8x128xbf16>
    %c0_1 = arith.constant 0 : index
    %c0_2 = arith.constant 0 : index
    %2 = vector.load %arg2[%c0_1, %c0_2] : memref<128x128xbf16, #tpu.memory_space<vmem>>, vector<128x128xbf16>
    %cst = arith.constant dense<0.000000e+00> : vector<8x128xf32>
    %3 = tpu.matmul %1, %2, %cst {dimension_numbers = #tpu.dot_dimension_numbers<[1], [0], [0], [1], [0, 0, 1, 1], [], []>} : vector<8x128xbf16>, vector<128x128xbf16>, vector<8x128xf32> -> vector<8x128xf32>
    %c0_3 = arith.constant 0 : index
    %c0_4 = arith.constant 0 : index
    %4 = vector.load %arg3[%c0_3, %c0_4] : memref<1x128xf32, #tpu.memory_space<vmem>>, vector<1x128xf32>
    %5 = vector.broadcast %4 : vector<1x128xf32> to vector<8x128xf32>
    %6 = arith.addf %3, %5 : vector<8x128xf32>
    %cst_5 = arith.constant 5.000000e-01 : f32
    %7 = vector.broadcast %cst_5 : f32 to vector<8x128xf32>
    %8 = arith.mulf %7, %6 : vector<8x128xf32>
    %cst_6 = arith.constant 0.707106769 : f32
    %9 = vector.broadcast %cst_6 : f32 to vector<8x128xf32>
    %10 = arith.mulf %6, %9 : vector<8x128xf32>
    %11 = math.absf %10 : vector<8x128xf32>
    %cst_7 = arith.constant 0.327591091 : f32
    %12 = vector.broadcast %cst_7 : f32 to vector<8x128xf32>
    %13 = arith.mulf %12, %11 : vector<8x128xf32>
    %cst_8 = arith.constant 1.000000e+00 : f32
    %14 = vector.broadcast %cst_8 : f32 to vector<8x128xf32>
    %15 = arith.addf %14, %13 : vector<8x128xf32>
    %16 = tpu.reciprocal %15 {approx = true} : vector<8x128xf32> -> vector<8x128xf32>
    %cst_9 = arith.constant 1.06140542 : f32
    %17 = vector.broadcast %cst_9 : f32 to vector<8x128xf32>
    %18 = arith.mulf %17, %16 : vector<8x128xf32>
    %cst_10 = arith.constant -1.45315206 : f32
    %19 = vector.broadcast %cst_10 : f32 to vector<8x128xf32>
    %20 = arith.addf %18, %19 : vector<8x128xf32>
    %21 = arith.mulf %20, %16 : vector<8x128xf32>
    %cst_11 = arith.constant 1.42141378 : f32
    %22 = vector.broadcast %cst_11 : f32 to vector<8x128xf32>
    %23 = arith.addf %21, %22 : vector<8x128xf32>
    %24 = arith.mulf %23, %16 : vector<8x128xf32>
    %cst_12 = arith.constant -0.284496725 : f32
    %25 = vector.broadcast %cst_12 : f32 to vector<8x128xf32>
    %26 = arith.addf %24, %25 : vector<8x128xf32>
    %27 = arith.mulf %26, %16 : vector<8x128xf32>
    %cst_13 = arith.constant 0.254829586 : f32
    %28 = vector.broadcast %cst_13 : f32 to vector<8x128xf32>
    %29 = arith.addf %27, %28 : vector<8x128xf32>
    %30 = arith.mulf %29, %16 : vector<8x128xf32>
    %cst_14 = arith.constant 0.000000e+00 : f32
    %31 = vector.broadcast %cst_14 : f32 to vector<8x128xf32>
    %32 = arith.subf %31, %11 : vector<8x128xf32>
    %33 = arith.mulf %32, %11 : vector<8x128xf32>
    %34 = math.exp %33 : vector<8x128xf32>
    %35 = arith.mulf %30, %34 : vector<8x128xf32>
    %cst_15 = arith.constant 1.000000e+00 : f32
    %36 = vector.broadcast %cst_15 : f32 to vector<8x128xf32>
    %37 = arith.subf %36, %35 : vector<8x128xf32>
    %cst_16 = arith.constant 0.000000e+00 : f32
    %38 = vector.broadcast %cst_16 : f32 to vector<8x128xf32>
    %39 = arith.cmpf olt, %10, %38 : vector<8x128xf32>
    %cst_17 = arith.constant 0.000000e+00 : f32
    %40 = vector.broadcast %cst_17 : f32 to vector<8x128xf32>
    %41 = arith.subf %40, %37 : vector<8x128xf32>
    %42 = arith.select %39, %41, %37 : vector<8x128xi1>, vector<8x128xf32>
    %cst_18 = arith.constant 1.000000e+00 : f32
    %43 = vector.broadcast %cst_18 : f32 to vector<8x128xf32>
    %44 = arith.addf %43, %42 : vector<8x128xf32>
    %45 = arith.mulf %8, %44 : vector<8x128xf32>
    %46 = arith.truncf %45 : vector<8x128xf32> to vector<8x128xbf16>
    %c0_19 = arith.constant 0 : index
    %c0_20 = arith.constant 0 : index
    %47 = vector.load %arg4[%c0_19, %c0_20] : memref<128x128xbf16, #tpu.memory_space<vmem>>, vector<128x128xbf16>
    %cst_21 = arith.constant dense<0.000000e+00> : vector<8x128xf32>
    %48 = tpu.matmul %46, %47, %cst_21 {dimension_numbers = #tpu.dot_dimension_numbers<[1], [0], [0], [1], [0, 0, 1, 1], [], []>} : vector<8x128xbf16>, vector<128x128xbf16>, vector<8x128xf32> -> vector<8x128xf32>
    %c0_22 = arith.constant 0 : index
    %c0_23 = arith.constant 0 : index
    %49 = vector.load %arg5[%c0_22, %c0_23] : memref<1x128xf32, #tpu.memory_space<vmem>>, vector<1x128xf32>
    %50 = vector.broadcast %49 : vector<1x128xf32> to vector<8x128xf32>
    %51 = arith.addf %48, %50 : vector<8x128xf32>
    %c0_24 = arith.constant 0 : index
    %c0_25 = arith.constant 0 : index
    %52 = vector.load %arg6[%c0_24, %c0_25] : memref<8x128xf32, #tpu.memory_space<vmem>>, vector<8x128xf32>
    tpu.vector_store %arg6[%c0_24, %c0_25], %51 {strides = array<i32>} : memref<8x128xf32, #tpu.memory_space<vmem>>, vector<8x128xf32>,
    return
  }
  func.func @transform_0(%arg0: i32) -> (i32, i32) {
    %c0_i32 = arith.constant 0 : i32
    %c0_i32_0 = arith.constant 0 : i32
    return %arg0, %c0_i32 : i32, i32
  }
  func.func @transform_1(%arg0: i32) -> (i32, i32) {
    %c0_i32 = arith.constant 0 : i32
    %c0_i32_0 = arith.constant 0 : i32
    %c0_i32_1 = arith.constant 0 : i32
    return %c0_i32, %c0_i32_0 : i32, i32
  }
  func.func @transform_2(%arg0: i32) -> (i32, i32) {
    %c0_i32 = arith.constant 0 : i32
    %c0_i32_0 = arith.constant 0 : i32
    %c0_i32_1 = arith.constant 0 : i32
    return %c0_i32, %c0_i32_0 : i32, i32
  }
  func.func @transform_3(%arg0: i32) -> (i32, i32) {
    %c0_i32 = arith.constant 0 : i32
    %c0_i32_0 = arith.constant 0 : i32
    %c0_i32_1 = arith.constant 0 : i32
    return %c0_i32, %c0_i32_0 : i32, i32
  }
  func.func @transform_4(%arg0: i32) -> (i32, i32) {
    %c0_i32 = arith.constant 0 : i32
    %c0_i32_0 = arith.constant 0 : i32
    %c0_i32_1 = arith.constant 0 : i32
    return %c0_i32, %c0_i32_0 : i32, i32
  }
  func.func @transform_5(%arg0: i32) -> (i32, i32) {
    %c0_i32 = arith.constant 0 : i32
    %c0_i32_0 = arith.constant 0 : i32
    return %arg0, %c0_i32 : i32, i32
  }
}

</mosaic_0001>

<llo_original>
// kernel: tpu_custom_call.1
$region0: #{tpu_custom_call.1}
  #allocation0 [shape = 'u32[]', space=smem, size = 0x4, offset = 0x4, fixed_abs, tag = 'smem constant byte address 0x4 - core index']
  #allocation1 [shape = 'u32[144,128]{1,0:T(1,128)}', space=vmem, size = 0x12000, scoped, tag = 'internal scratch']
  %s0 = inlined_call_operand.hbm [shape: f32[16,128], index: 0, kind: input, shape index: {}]
  %s1 = inlined_call_operand.hbm [shape: bf16[128,128], index: 1, kind: input, shape index: {}]
  %s2 = inlined_call_operand.vmem [shape: f32[1,128], index: 2, kind: input, shape index: {}]
  %s3 = inlined_call_operand.hbm [shape: bf16[128,128], index: 3, kind: input, shape index: {}]
  %s4 = inlined_call_operand.vmem [shape: f32[1,128], index: 4, kind: input, shape index: {}]
  %s5 = inlined_call_operand.hbm [shape: f32[16,128], index: 5, kind: output, shape index: {}]
  %s6 = sld [smem:[#allocation0]]
  $region65: #{tpu_custom_call.1} parent=0
    _
  %s8 = ssub.s32 1, %s6
  %s9 = scalar_select 0, %s8, %s6
  $region1: #{tpu_custom_call.1} parent=0
    #allocation2 [shape = 'u8[8192]{0}', space=vmem, size = 0x2000, scoped, tag = 'input window, operand 0']
    #allocation3 [shape = 's32[2]{0}', space=sflag, size = 0x8, scoped, tag = 'scoped memory for tpu_custom_call.1']
    #allocation4 [shape = 's32[2]{0}', space=sflag, size = 0x8, scoped, tag = 'scoped memory for tpu_custom_call.1']
    #allocation5 [shape = 'u8[32768]{0}', space=vmem, size = 0x8000, scoped, tag = 'input window, operand 1, single buffered']
    #allocation6 [shape = 's32[1]{0}', space=sflag, size = 0x4, scoped, tag = 'scoped memory for tpu_custom_call.1']
    #allocation7 [shape = 'u8[32768]{0}', space=vmem, size = 0x8000, scoped, tag = 'input window, operand 3, single buffered']
    #allocation8 [shape = 'u8[8192]{0}', space=vmem, size = 0x2000, scoped, tag = 'output window, operand 0']
    %10 = vsyncpa [#allocation3], 0
    %s11 = scalar_lea.sflag [#allocation3], 1
    %12 = vsyncpa %s11, 0
    %13 = vsyncpa [#allocation6], 0
    %14 = vsyncpa [#allocation4], 0
    %s15 = scalar_lea.sflag [#allocation4], 1
    %16 = vsyncpa %s15, 0
    loop: start=0, step=1, limit=4
    $region2: #{tpu_custom_call.1} parent=1 // loop_pre_header
      _
    $region3: #{tpu_custom_call.1} parent=1 // loop_header
      %s18 = sphi 0, %s22
      %p19 = scmp.ge.s32.totalorder %s18, 4
      %s28 = sphi 0, %s30
      %s31 = sphi 0, %s28
      %s32 = sphi 0, %s31
      %s48 = sphi 0, %s32
      %s52 = sphi 0, %s52
      %s54 = sphi 0, %s52
      %s55 = sphi 0, %s54
      %s69 = sphi 0, %s55
      %s73 = sphi 0, %s73
      %s75 = sphi 0, %s73
      %s76 = sphi 0, %s75
      %s90 = sphi 0, %s76
      %s94 = sphi 0, %s94
      %s96 = sphi 0, %s94
      %s97 = sphi 0, %s96
      %s111 = sphi 0, %s97
      %s115 = sphi 0, %s115
      %s117 = sphi 0, %s115
      %s118 = sphi 0, %s117
      %s132 = sphi 0, %s118
      %s138 = sphi 0, %s140
      %s141 = sphi 0, %s138
      %s142 = sphi 0, %s141
      %s158 = sphi 0, %s142
    $region4: #{tpu_custom_call.1} parent=1 // loop_header_branch
      %21 = sbr.rel (%p19) target = $region8
    $region5: #{tpu_custom_call.1} parent=1 // loop_body
      %s23 = ssub.s32 %s18, 1
      %s24 = ssub.s32 %s18, 2
      %s25 = sadd.s32 %s18, 1
      %s26 = ssub.s32 %s18, %s25
      %p27 = scmp.eq.s32.totalorder %s26, 0
      %s29 = sadd.s32 %s28, 1
      %s30 = scalar_select %p27, %s28, %s29
      %p33 = pneg %p27
      %p34 = scmp.eq.s32.totalorder %s18, 1
      %p35 = por %p33, %p34
      %p36 = scmp.ne.s32.totalorder %s28, %s31
      %p37 = scmp.eq.s32.totalorder %s18, 0
      %p38 = por %p36, %p37
      %p39 = scmp.ne.s32.totalorder %s28, %s31
      %p40 = scmp.eq.s32.totalorder %s23, 1
      %p41 = por %p39, %p40
      %p42 = scmp.ne.s32.totalorder %s31, %s32
      %p43 = scmp.eq.s32.totalorder %s23, 0
      %p44 = por %p42, %p43
      %p45 = scmp.ne.s32.totalorder %s31, %s32
      %p46 = scmp.eq.s32.totalorder %s24, 1
      %p47 = por %p45, %p46
      %p49 = scmp.ne.s32.totalorder %s32, %s48
      %p50 = scmp.eq.s32.totalorder %s24, 0
      %p51 = por %p49, %p50
      %s53 = sadd.s32 %s52, 1
      %p56 = scmp.eq.s32.totalorder %s18, 1
      %p57 = scmp.ne.s32.totalorder %s52, %s54
      %p58 = scmp.eq.s32.totalorder %s18, 0
      %p59 = por %p57, %p58
      %p60 = scmp.ne.s32.totalorder %s52, %s54
      %p61 = scmp.eq.s32.totalorder %s23, 1
      %p62 = por %p60, %p61
      %p63 = scmp.ne.s32.totalorder %s54, %s55
      %p64 = scmp.eq.s32.totalorder %s23, 0
      %p65 = por %p63, %p64
      %p66 = scmp.ne.s32.totalorder %s54, %s55
      %p67 = scmp.eq.s32.totalorder %s24, 1
      %p68 = por %p66, %p67
      %p70 = scmp.ne.s32.totalorder %s55, %s69
      %p71 = scmp.eq.s32.totalorder %s24, 0
      %p72 = por %p70, %p71
      %s74 = sadd.s32 %s73, 1
      %p77 = scmp.eq.s32.totalorder %s18, 1
      %p78 = scmp.ne.s32.totalorder %s73, %s75
      %p79 = scmp.eq.s32.totalorder %s18, 0
      %p80 = por %p78, %p79
      %p81 = scmp.ne.s32.totalorder %s73, %s75
      %p82 = scmp.eq.s32.totalorder %s23, 1
      %p83 = por %p81, %p82
      %p84 = scmp.ne.s32.totalorder %s75, %s76
      %p85 = scmp.eq.s32.totalorder %s23, 0
      %p86 = por %p84, %p85
      %p87 = scmp.ne.s32.totalorder %s75, %s76
      %p88 = scmp.eq.s32.totalorder %s24, 1
      %p89 = por %p87, %p88
      %p91 = scmp.ne.s32.totalorder %s76, %s90
      %p92 = scmp.eq.s32.totalorder %s24, 0
      %p93 = por %p91, %p92
      %s95 = sadd.s32 %s94, 1
      %p98 = scmp.eq.s32.totalorder %s18, 1
      %p99 = scmp.ne.s32.totalorder %s94, %s96
      %p100 = scmp.eq.s32.totalorder %s18, 0
      %p101 = por %p99, %p100
      %p102 = scmp.ne.s32.totalorder %s94, %s96
      %p103 = scmp.eq.s32.totalorder %s23, 1
      %p104 = por %p102, %p103
      %p105 = scmp.ne.s32.totalorder %s96, %s97
      %p106 = scmp.eq.s32.totalorder %s23, 0
      %p107 = por %p105, %p106
      %p108 = scmp.ne.s32.totalorder %s96, %s97
      %p109 = scmp.eq.s32.totalorder %s24, 1
      %p110 = por %p108, %p109
      %p112 = scmp.ne.s32.totalorder %s97, %s111
      %p113 = scmp.eq.s32.totalorder %s24, 0
      %p114 = por %p112, %p113
      %s116 = sadd.s32 %s115, 1
      %p119 = scmp.eq.s32.totalorder %s18, 1
      %p120 = scmp.ne.s32.totalorder %s115, %s117
      %p121 = scmp.eq.s32.totalorder %s18, 0
      %p122 = por %p120, %p121
      %p123 = scmp.ne.s32.totalorder %s115, %s117
      %p124 = scmp.eq.s32.totalorder %s23, 1
      %p125 = por %p123, %p124
      %p126 = scmp.ne.s32.totalorder %s117, %s118
      %p127 = scmp.eq.s32.totalorder %s23, 0
      %p128 = por %p126, %p127
      %p129 = scmp.ne.s32.totalorder %s117, %s118
      %p130 = scmp.eq.s32.totalorder %s24, 1
      %p131 = por %p129, %p130
      %p133 = scmp.ne.s32.totalorder %s118, %s132
      %p134 = scmp.eq.s32.totalorder %s24, 0
      %p135 = por %p133, %p134
      %s136 = ssub.s32 %s18, %s25
      %p137 = scmp.eq.s32.totalorder %s136, 0
      %s139 = sadd.s32 %s138, 1
      %s140 = scalar_select %p137, %s138, %s139
      %p143 = pneg %p137
      %p144 = scmp.eq.s32.totalorder %s18, 1
      %p145 = por %p143, %p144
      %p146 = scmp.ne.s32.totalorder %s138, %s141
      %p147 = scmp.eq.s32.totalorder %s18, 0
      %p148 = por %p146, %p147
      %p149 = scmp.ne.s32.totalorder %s138, %s141
      %p150 = scmp.eq.s32.totalorder %s23, 1
      %p151 = por %p149, %p150
      %p152 = scmp.ne.s32.totalorder %s141, %s142
      %p153 = scmp.eq.s32.totalorder %s23, 0
      %p154 = por %p152, %p153
      %p155 = scmp.ne.s32.totalorder %s141, %s142
      %p156 = scmp.eq.s32.totalorder %s24, 1
      %p157 = por %p155, %p156
      %p159 = scmp.ne.s32.totalorder %s142, %s158
      %p160 = scmp.eq.s32.totalorder %s24, 0
      %p161 = por %p159, %p160
      %p162 = scmp.le.s32.totalorder 1, %s18
      %p163 = scmp.lt.s32.totalorder %s18, 3
      %p164 = pnand %p162, %p163
      %p165 = pneg %p164
      // Predicated region
      $region9: #{tpu_custom_call.1} parent=5 // pred_check
        _
      $region10: #{tpu_custom_call.1} parent=5 // pred_check_branch
        %167 = sbr.rel (%p164) target = $region12
      $region11: #{tpu_custom_call.1} parent=5 // pred_region
        %s168 = ssub.s32 %s18, 1
        // Predicated region
        $region13: #{tpu_custom_call.1} parent=11 // pred_check
          %p169 = pneg %p65
        $region14: #{tpu_custom_call.1} parent=11 // pred_check_branch
          %171 = sbr.rel (%p169) target = $region16
        $region15: #{tpu_custom_call.1} parent=11 // pred_region
          %s173 = ssub.s32 1024, 1024
          %174 = vsyncadd [#allocation6], %s173
          %s175 = sshll.u32 [#allocation5], 4
          %s176 = int_to_ptr.vmem [resolvable:$true] %s175
          %181 = dma.hbm_to_vmem [thread:$0]  %s1, 1024, %s176, [#allocation6], 64, 64, 4
        $region16: #{tpu_custom_call.1} parent=11 // pred_fallthru
          _
        // Predicated region
        $region17: #{tpu_custom_call.1} parent=11 // pred_check
          %p182 = pneg %p86
        $region18: #{tpu_custom_call.1} parent=11 // pred_check_branch
          %184 = sbr.rel (%p182) target = $region20
        $region19: #{tpu_custom_call.1} parent=11 // pred_region
          _
        $region20: #{tpu_custom_call.1} parent=11 // pred_fallthru
          _
        // Predicated region
        $region21: #{tpu_custom_call.1} parent=11 // pred_check
          %p185 = pneg %p107
        $region22: #{tpu_custom_call.1} parent=11 // pred_check_branch
          %187 = sbr.rel (%p185) target = $region24
        $region23: #{tpu_custom_call.1} parent=11 // pred_region
          %s189 = ssub.s32 1024, 1024
          %190 = vsyncadd [#allocation6], %s189
          %s191 = sshll.u32 [#allocation7], 4
          %s192 = int_to_ptr.vmem [resolvable:$true] %s191
          %197 = dma.hbm_to_vmem [thread:$0]  %s3, 1024, %s192, [#allocation6], 64, 64, 4
        $region24: #{tpu_custom_call.1} parent=11 // pred_fallthru
          _
        // Predicated region
        $region25: #{tpu_custom_call.1} parent=11 // pred_check
          %p198 = pneg %p128
        $region26: #{tpu_custom_call.1} parent=11 // pred_check_branch
          %200 = sbr.rel (%p198) target = $region28
        $region27: #{tpu_custom_call.1} parent=11 // pred_region
          _
        $region28: #{tpu_custom_call.1} parent=11 // pred_fallthru
          _
      $region12: #{tpu_custom_call.1} parent=5 // pred_fallthru
        _
      %p201 = scmp.lt.s32.totalorder %s18, 2
      // Predicated region
      $region29: #{tpu_custom_call.1} parent=5 // pred_check
        %p202 = pneg %p201
      $region30: #{tpu_custom_call.1} parent=5 // pred_check_branch
        %204 = sbr.rel (%p202) target = $region32
      $region31: #{tpu_custom_call.1} parent=5 // pred_region
        // Predicated region
        $region33: #{tpu_custom_call.1} parent=31 // pred_check
          %p205 = pneg %p38
        $region34: #{tpu_custom_call.1} parent=31 // pred_check_branch
          %207 = sbr.rel (%p205) target = $region36
        $region35: #{tpu_custom_call.1} parent=31 // pred_region
          %s208 = sand.u32 %s28, 1
          %s209 = scalar_lea.sflag [#allocation3], %s208
          %s210 = sand.u32 %s28, 1
          %s211 = smul.addr %s210, 8
          %s212 = scalar_lea.vmem [#allocation2], %s211
          %s214 = ssub.s32 128, 128
          %215 = vsyncadd %s209, %s214
          %s216 = smul.addr %s18, 128
          %s217 = scalar_lea.hbm %s0, %s216
          %s219 = sshll.u32 %s212, 4
          %s220 = int_to_ptr.vmem [resolvable:$true] %s219
          %222 = dma.hbm_to_vmem [thread:$0]  %s217, 128, %s220, %s209
        $region36: #{tpu_custom_call.1} parent=31 // pred_fallthru
          _
      $region32: #{tpu_custom_call.1} parent=5 // pred_fallthru
        _
      %p223 = scmp.le.s32.totalorder 1, %s18
      %p224 = scmp.lt.s32.totalorder %s18, 3
      %p225 = pnand %p223, %p224
      %p226 = pneg %p225
      // Predicated region
      $region37: #{tpu_custom_call.1} parent=5 // pred_check
        _
      $region38: #{tpu_custom_call.1} parent=5 // pred_check_branch
        %228 = sbr.rel (%p225) target = $region40
      $region39: #{tpu_custom_call.1} parent=5 // pred_region
        %s229 = ssub.s32 %s18, 1
        %s230 = sand.u32 %s31, 1
        %s231 = scalar_lea.sflag [#allocation3], %s230
        %s232 = sand.u32 %s31, 1
        %s233 = smul.addr %s232, 8
        %s234 = scalar_lea.vmem [#allocation2], %s233
        // Predicated region
        $region41: #{tpu_custom_call.1} parent=39 // pred_check
          %p235 = pneg %p44
        $region42: #{tpu_custom_call.1} parent=39 // pred_check_branch
          %237 = sbr.rel (%p235) target = $region44
        $region43: #{tpu_custom_call.1} parent=39 // pred_region
          %238 = dma.done %s231, 128
        $region44: #{tpu_custom_call.1} parent=39 // pred_fallthru
          _
        // Predicated region
        $region45: #{tpu_custom_call.1} parent=39 // pred_check
          %p239 = pneg %p65
        $region46: #{tpu_custom_call.1} parent=39 // pred_check_branch
          %241 = sbr.rel (%p239) target = $region48
        $region47: #{tpu_custom_call.1} parent=39 // pred_region
          %242 = dma.done [#allocation6], 1024
        $region48: #{tpu_custom_call.1} parent=39 // pred_fallthru
          _
        // Predicated region
        $region49: #{tpu_custom_call.1} parent=39 // pred_check
          %p243 = pneg %p107
        $region50: #{tpu_custom_call.1} parent=39 // pred_check_branch
          %245 = sbr.rel (%p243) target = $region52
        $region51: #{tpu_custom_call.1} parent=39 // pred_region
          %246 = dma.done [#allocation6], 1024
        $region52: #{tpu_custom_call.1} parent=39 // pred_fallthru
          _
        %s247 = sand.u32 %s31, 1
        %s248 = scalar_lea.sflag [#allocation3], %s247
        %s249 = sand.u32 %s31, 1
        %s250 = smul.addr %s249, 8
        %s251 = scalar_lea.vmem [#allocation2], %s250
        %p252 = pneg %p44
        %p253 = pneg %p41
        %p254 = pneg %p65
        %p255 = pneg %p62
        %p256 = pneg %p86
        %p257 = pneg %p83
        %p258 = pneg %p107
        %p259 = pneg %p104
        %p260 = pneg %p128
        %p261 = pneg %p125
        %p262 = pneg %p154
        %p263 = pneg %p151
        %s264 = sand.u32 %s141, 1
        %s265 = scalar_lea.sflag [#allocation4], %s264
        %s266 = sand.u32 %s141, 1
        %s267 = smul.addr %s266, 8
        %s268 = scalar_lea.vmem [#allocation8], %s267
        %v270 = vld [vmem:[%s234] sm:$0xff]
        %v271 = vpack.c.bf16 %v270, %v270
        %v272 = vld [vmem:[#allocation5] sm:$0xf]
        %v273 = vld [vmem:[#allocation5 + $0x4] sm:$0xf]
        %v274 = vld [vmem:[#allocation5 + $0x8] sm:$0xf]
        %v275 = vld [vmem:[#allocation5 + $0xc] sm:$0xf]
        %v276 = vld [vmem:[#allocation5 + $0x10] sm:$0xf]
        %v277 = vld [vmem:[#allocation5 + $0x14] sm:$0xf]
        %v278 = vld [vmem:[#allocation5 + $0x18] sm:$0xf]
        %v279 = vld [vmem:[#allocation5 + $0x1c] sm:$0xf]
        %v280 = vld [vmem:[#allocation5 + $0x20] sm:$0xf]
        %v281 = vld [vmem:[#allocation5 + $0x24] sm:$0xf]
        %v282 = vld [vmem:[#allocation5 + $0x28] sm:$0xf]
        %v283 = vld [vmem:[#allocation5 + $0x2c] sm:$0xf]
        %v284 = vld [vmem:[#allocation5 + $0x30] sm:$0xf]
        %v285 = vld [vmem:[#allocation5 + $0x34] sm:$0xf]
        %v286 = vld [vmem:[#allocation5 + $0x38] sm:$0xf]
        %v287 = vld [vmem:[#allocation5 + $0x3c] sm:$0xf]
        %v288 = vld [vmem:[%s2] sm:$0x1]
        %v290 = vlaneseq
        %v291 = vshrl.u32 %v290, 7
        %v292 = vsub.s32 0, %v291
        %v293 = vrot.slane %v288, %v292
        %v311 = vunpack.c.l.b16 %v272
        %v312 = vunpack.c.l.b16 %v273
        %v313 = vunpack.c.l.b16 %v274
        %v314 = vunpack.c.l.b16 %v275
        %v315 = vunpack.c.l.b16 %v276
        %v316 = vunpack.c.l.b16 %v277
        %v317 = vunpack.c.l.b16 %v278
        %v318 = vunpack.c.l.b16 %v279
        %v319 = vunpack.c.l.b16 %v280
        %v320 = vunpack.c.l.b16 %v281
        %v321 = vunpack.c.l.b16 %v282
        %v322 = vunpack.c.l.b16 %v283
        %v323 = vunpack.c.l.b16 %v284
        %v324 = vunpack.c.l.b16 %v285
        %v325 = vunpack.c.l.b16 %v286
        %v326 = vunpack.c.l.b16 %v287
        %v327 = vpack.c.b16 %v312, %v311
        %v328 = vpack.c.b16 %v314, %v313
        %v329 = vpack.c.b16 %v316, %v315
        %v330 = vpack.c.b16 %v318, %v317
        %v331 = vpack.c.b16 %v320, %v319
        %v332 = vpack.c.b16 %v322, %v321
        %v333 = vpack.c.b16 %v324, %v323
        %v334 = vpack.c.b16 %v326, %v325
        %343 = vmatprep.subr.bf16.mxu0 0
        %344 = vmatpush1.bf16.msra.mxu0 %v327
        %345 = vmatprep.subr.bf16.mxu0 0
        %346 = vmatpush1.bf16.msra.mxu0 %v328
        %347 = vmatprep.subr.bf16.mxu0 0
        %348 = vmatpush1.bf16.msra.mxu0 %v329
        %349 = vmatprep.subr.bf16.mxu0 0
        %350 = vmatpush1.bf16.msra.mxu0 %v330
        %351 = vmatprep.subr.bf16.mxu0 0
        %352 = vmatpush1.bf16.msra.mxu0 %v331
        %353 = vmatprep.subr.bf16.mxu0 0
        %354 = vmatpush1.bf16.msra.mxu0 %v332
        %355 = vmatprep.subr.bf16.mxu0 0
        %356 = vmatpush1.bf16.msra.mxu0 %v333
        %357 = vmatprep.subr.bf16.mxu0 0
        %358 = vmatpush1.bf16.msra.mxu0 %v334
        %359 = vmatprep.subr.bf16.mxu0 0
        %360 = vmatpush1.bf16.msra.mxu0 0
        %361 = vmatprep.subr.bf16.mxu0 0
        %362 = vmatpush1.bf16.msra.mxu0 0
        %363 = vmatprep.subr.bf16.mxu0 0
        %364 = vmatpush1.bf16.msra.mxu0 0
        %365 = vmatprep.subr.bf16.mxu0 0
        %366 = vmatpush1.bf16.msra.mxu0 0
        %367 = vmatprep.subr.bf16.mxu0 0
        %368 = vmatpush1.bf16.msra.mxu0 0
        %369 = vmatprep.subr.bf16.mxu0 0
        %370 = vmatpush1.bf16.msra.mxu0 0
        %371 = vmatprep.subr.bf16.mxu0 0
        %372 = vmatpush1.bf16.msra.mxu0 0
        %373 = vmatprep.subr.bf16.mxu0 0
        %374 = vmatpush1.bf16.msra.mxu0 0
        %375 = vmatprep.mubr.bf16.mxu0 0
        %376 = vmatmul.mubr.bf16.gmra.mrb[0].mxu0 %v271
        %v377 = vpop.f32.mrb[0].mxu0
        %v378 = vadd.f32 %v293, %v377
        %v379 = vpop.f32.mrb[0].mxu0
        %v380 = vpop.f32.mrb[0].mxu0
        %v381 = vpop.f32.mrb[0].mxu0
        %382 = vdwg.mxu0
        %v383 = vmul.f32 %v378, 0.5
        %v384 = vmul.f32 %v378, 0.70710677
        %v385 = vand.u32 2147483647, %v384
        %v386 = vmul.f32 %v385, 0.3275911
        %v387 = vadd.f32 %v386, 1.0
        %v388 = vrcp.pop %v387
        %v389 = vmul.f32 %v388, 1.0614054
        %v390 = vadd.f32 %v389, -1.4531521
        %v391 = vmul.f32 %v390, %v388
        %v392 = vadd.f32 %v391, 1.4214138
        %v393 = vmul.f32 %v392, %v388
        %v394 = vadd.f32 %v393, -0.28449672
        %v395 = vmul.f32 %v394, %v388
        %v396 = vadd.f32 %v395, 0.2548296
        %v397 = vmul.f32 %v396, %v388
        %v398 = vsub.f32 0.0, %v385
        %v399 = vmul.f32 %v398, %v385
        %v400 = vmul.f32 %v399, 1.442695
        %v401 = vpow.pop %v400
        %v402 = vmul.f32 %v397, %v401
        %v403 = vsub.f32 1.0, %v402
        %vm404 = vcmp.lt.f32.partialorder %v384, 0.0
        %v405 = vsub.f32 0.0, %v403
        %v406 = vsel %vm404, %v405, %v403
        %v407 = vadd.f32 %v406, 1.0
        %v408 = vmul.f32 %v383, %v407
        %v409 = vpack.c.bf16 %v408, %v408
        %v410 = vld [vmem:[#allocation7] sm:$0xf]
        %v411 = vld [vmem:[#allocation7 + $0x4] sm:$0xf]
        %v412 = vld [vmem:[#allocation7 + $0x8] sm:$0xf]
        %v413 = vld [vmem:[#allocation7 + $0xc] sm:$0xf]
        %v414 = vld [vmem:[#allocation7 + $0x10] sm:$0xf]
        %v415 = vld [vmem:[#allocation7 + $0x14] sm:$0xf]
        %v416 = vld [vmem:[#allocation7 + $0x18] sm:$0xf]
        %v417 = vld [vmem:[#allocation7 + $0x1c] sm:$0xf]
        %v418 = vld [vmem:[#allocation7 + $0x20] sm:$0xf]
        %v419 = vld [vmem:[#allocation7 + $0x24] sm:$0xf]
        %v420 = vld [vmem:[#allocation7 + $0x28] sm:$0xf]
        %v421 = vld [vmem:[#allocation7 + $0x2c] sm:$0xf]
        %v422 = vld [vmem:[#allocation7 + $0x30] sm:$0xf]
        %v423 = vld [vmem:[#allocation7 + $0x34] sm:$0xf]
        %v424 = vld [vmem:[#allocation7 + $0x38] sm:$0xf]
        %v425 = vld [vmem:[#allocation7 + $0x3c] sm:$0xf]
        %v426 = vld [vmem:[%s4] sm:$0x1]
        %v428 = vlaneseq
        %v429 = vshrl.u32 %v428, 7
        %v430 = vsub.s32 0, %v429
        %v431 = vrot.slane %v426, %v430
        %v449 = vunpack.c.l.b16 %v410
        %v450 = vunpack.c.l.b16 %v411
        %v451 = vunpack.c.l.b16 %v412
        %v452 = vunpack.c.l.b16 %v413
        %v453 = vunpack.c.l.b16 %v414
        %v454 = vunpack.c.l.b16 %v415
        %v455 = vunpack.c.l.b16 %v416
        %v456 = vunpack.c.l.b16 %v417
        %v457 = vunpack.c.l.b16 %v418
        %v458 = vunpack.c.l.b16 %v419
        %v459 = vunpack.c.l.b16 %v420
        %v460 = vunpack.c.l.b16 %v421
        %v461 = vunpack.c.l.b16 %v422
        %v462 = vunpack.c.l.b16 %v423
        %v463 = vunpack.c.l.b16 %v424
        %v464 = vunpack.c.l.b16 %v425
        %v465 = vpack.c.b16 %v450, %v449
        %v466 = vpack.c.b16 %v452, %v451
        %v467 = vpack.c.b16 %v454, %v453
        %v468 = vpack.c.b16 %v456, %v455
        %v469 = vpack.c.b16 %v458, %v457
        %v470 = vpack.c.b16 %v460, %v459
        %v471 = vpack.c.b16 %v462, %v461
        %v472 = vpack.c.b16 %v464, %v463
        %481 = vmatprep.subr.bf16.mxu0 0
        %482 = vmatpush1.bf16.msra.mxu0 %v465
        %483 = vmatprep.subr.bf16.mxu0 0
        %484 = vmatpush1.bf16.msra.mxu0 %v466
        %485 = vmatprep.subr.bf16.mxu0 0
        %486 = vmatpush1.bf16.msra.mxu0 %v467
        %487 = vmatprep.subr.bf16.mxu0 0
        %488 = vmatpush1.bf16.msra.mxu0 %v468
        %489 = vmatprep.subr.bf16.mxu0 0
        %490 = vmatpush1.bf16.msra.mxu0 %v469
        %491 = vmatprep.subr.bf16.mxu0 0
        %492 = vmatpush1.bf16.msra.mxu0 %v470
        %493 = vmatprep.subr.bf16.mxu0 0
        %494 = vmatpush1.bf16.msra.mxu0 %v471
        %495 = vmatprep.subr.bf16.mxu0 0
        %496 = vmatpush1.bf16.msra.mxu0 %v472
        %497 = vmatprep.subr.bf16.mxu0 0
        %498 = vmatpush1.bf16.msra.mxu0 0
        %499 = vmatprep.subr.bf16.mxu0 0
        %500 = vmatpush1.bf16.msra.mxu0 0
        %501 = vmatprep.subr.bf16.mxu0 0
        %502 = vmatpush1.bf16.msra.mxu0 0
        %503 = vmatprep.subr.bf16.mxu0 0
        %504 = vmatpush1.bf16.msra.mxu0 0
        %505 = vmatprep.subr.bf16.mxu0 0
        %506 = vmatpush1.bf16.msra.mxu0 0
        %507 = vmatprep.subr.bf16.mxu0 0
        %508 = vmatpush1.bf16.msra.mxu0 0
        %509 = vmatprep.subr.bf16.mxu0 0
        %510 = vmatpush1.bf16.msra.mxu0 0
        %511 = vmatprep.subr.bf16.mxu0 0
        %512 = vmatpush1.bf16.msra.mxu0 0
        %513 = vmatprep.mubr.bf16.mxu0 0
        %514 = vmatmul.mubr.bf16.gmra.mrb[0].mxu0 %v409
        %v515 = vpop.f32.mrb[0].mxu0
        %v516 = vadd.f32 %v431, %v515
        %v517 = vpop.f32.mrb[0].mxu0
        %v518 = vpop.f32.mrb[0].mxu0
        %v519 = vpop.f32.mrb[0].mxu0
        %520 = vdwg.mxu0
        %521 = vst [vmem:[%s268] sm:$0xff] %v516
        %s522 = sand.u32 %s141, 1
        %s523 = scalar_lea.sflag [#allocation4], %s522
        %s524 = sand.u32 %s141, 1
        %s525 = smul.addr %s524, 8
        %s526 = scalar_lea.vmem [#allocation8], %s525
        // Predicated region
        $region53: #{tpu_custom_call.1} parent=39 // pred_check
          %p527 = pneg %p151
        $region54: #{tpu_custom_call.1} parent=39 // pred_check_branch
          %529 = sbr.rel (%p527) target = $region56
        $region55: #{tpu_custom_call.1} parent=39 // pred_region
          %s531 = ssub.s32 128, 128
          %532 = vsyncadd %s523, %s531
          %s533 = smul.addr %s23, 128
          %s534 = scalar_lea.hbm %s5, %s533
          %s536 = sshll.u32 %s526, 4
          %s537 = int_to_ptr.vmem [resolvable:$true] %s536
          %539 = dma.vmem_to_hbm [thread:$0]  %s537, 128, %s534, %s523
        $region56: #{tpu_custom_call.1} parent=39 // pred_fallthru
          _
      $region40: #{tpu_custom_call.1} parent=5 // pred_fallthru
        _
      %p540 = scmp.le.s32.totalorder 2, %s18
      // Predicated region
      $region57: #{tpu_custom_call.1} parent=5 // pred_check
        %p541 = pneg %p540
      $region58: #{tpu_custom_call.1} parent=5 // pred_check_branch
        %543 = sbr.rel (%p541) target = $region60
      $region59: #{tpu_custom_call.1} parent=5 // pred_region
        %s544 = ssub.s32 %s18, 2
        // Predicated region
        $region61: #{tpu_custom_call.1} parent=59 // pred_check
          %p545 = pneg %p157
        $region62: #{tpu_custom_call.1} parent=59 // pred_check_branch
          %547 = sbr.rel (%p545) target = $region64
        $region63: #{tpu_custom_call.1} parent=59 // pred_region
          %s548 = sand.u32 %s142, 1
          %s549 = scalar_lea.sflag [#allocation4], %s548
          %s550 = sand.u32 %s142, 1
          %s551 = smul.addr %s550, 8
          %s552 = scalar_lea.vmem [#allocation8], %s551
          %553 = dma.done %s549, 128
        $region64: #{tpu_custom_call.1} parent=59 // pred_fallthru
          _
      $region60: #{tpu_custom_call.1} parent=5 // pred_fallthru
        _
    $region6: #{tpu_custom_call.1} parent=1 // loop_footer
      %s22 = sadd.s32 1, %s18
    $region7: #{tpu_custom_call.1} parent=1 // loop_footer_branch
      %17 = sbr.rel target = $region3
    $region8: #{tpu_custom_call.1} parent=1 // loop_exit
      _
    %554 = vsyncpa [#allocation3], 1
    %s555 = scalar_lea.sflag [#allocation3], 1
    %556 = vsyncpa %s555, 1
    %557 = vsyncpa [#allocation6], 1
    %558 = vsyncpa [#allocation4], 1
    %s559 = scalar_lea.sflag [#allocation4], 1
    %560 = vsyncpa %s559, 1

</llo_original>
